<compile_context>
chip_gen: v7x
topology: tpu7x:2x2x1
jax: 0.10.0
libtpu: 0.0.40
codegen_flags: <defaults>
</compile_context>

<pallas_src>
import functools

import jax
import jax.numpy as jnp
import numpy as np
from jax import lax
from jax.experimental import pallas as pl
from jax.experimental.pallas import tpu as pltpu


# ---------------------------------------------------------------------------
# In-kernel helpers
# ---------------------------------------------------------------------------
def _chunk_sim(x_bf, f_bf, lab, c_pad):
    """Class-aggregated similarity contribution of one (tn, D) feature chunk."""
    # p[b, s] = <x_b, f_s>   (bf16 MXU operands, f32 accumulation)
    p = lax.dot_general(x_bf, f_bf,
                        dimension_numbers=(((1,), (1,)), ((), ())),
                        preferred_element_type=jnp.float32)            # (B, tn)
    # one-hot rebuilt in-kernel from int32 labels (no (N, Cp) HBM stream)
    tn = f_bf.shape[0]
    iota_c = lax.broadcasted_iota(jnp.int32, (tn, c_pad), 1)
    onehot = jnp.where(iota_c == lab, 1.0, 0.0).astype(jnp.bfloat16)    # (tn, Cp)
    # index_add over labels == p @ onehot (bf16 selection, exact; f32 accumulation)
    return jnp.dot(p.astype(jnp.bfloat16), onehot,
                   preferred_element_type=jnp.float32)                  # (B, Cp)


def _combine_splits(arr, n_splits, rows):
    """Sum the per-TensorCore partial blocks stacked along the row axis."""
    out = arr[0:rows, :]
    for p in range(1, n_splits):
        out = out + arr[p * rows:(p + 1) * rows, :]
    return out


def _focal_from_sim(sim, counts, tonehot, n_b, inv_temp):
    """Masked softmax over classes + focal loss -> (1, 1) mean loss."""
    cls_mask = jnp.where(counts > 0.0, 1.0, 0.0)                        # (1, Cp)
    den = cls_mask * counts + (1.0 - cls_mask)
    sim_t = sim * (inv_temp / den)                                      # (B, Cp)
    masked_exps = jnp.exp(sim_t) * cls_mask
    sums = jnp.sum(masked_exps, axis=1, keepdims=True) + 1e-6
    ms = masked_exps / sums                                             # exact division
    focal_all = (tonehot - tonehot * ms) ** 4
    rows = jnp.sum(-(focal_all * jnp.log(ms + 1e-6)), axis=1, keepdims=True)
    return jnp.sum(rows, axis=0, keepdims=True) * (1.0 / n_b)           # (1, 1)


# ---------------------------------------------------------------------------
# Pass 1: streamed accumulation over the feature bank.  grid = (P, K)
#   P : megacore split of the N reduction ("parallel")
#   K : feature chunks per core ("arbitrary"), accumulated in resident out blocks
# ---------------------------------------------------------------------------
def _accum_focal_kernel(x_ref, f_ref, lab_ref, sim_ref, *, c_pad):
    @pl.when(pl.program_id(1) == 0)
    def _():
        sim_ref[...] = jnp.zeros_like(sim_ref)

    sim_ref[...] += _chunk_sim(x_ref[...], f_ref[...], lab_ref[...], c_pad)


def _accum_full_kernel(x_ref, f_ref, lab_ref, tgt_ref, sim_ref, mem_ref, *, c_pad):
    @pl.when(pl.program_id(1) == 0)
    def _():
        sim_ref[...] = jnp.zeros_like(sim_ref)
        mem_ref[...] = jnp.zeros_like(mem_ref)

    f_bf = f_ref[...]                                                   # (tn, D) bf16
    lab = lab_ref[...]                                                  # (tn, 1) int32
    sim_ref[...] += _chunk_sim(x_ref[...], f_bf, lab, c_pad)

    # mem[b, :] += sum_{s: label_s == target_b} f_s   (class-sum gathered at targets;
    # the 1/count scale cancels in the cosine, so no (Cp, D) scratch is needed)
    w_t = jnp.where(lab == tgt_ref[...], 1.0, 0.0).astype(jnp.bfloat16)  # (tn, B)
    mem_ref[...] += lax.dot_general(w_t, f_bf,
                                    dimension_numbers=(((0,), (0,)), ((), ())),
                                    preferred_element_type=jnp.float32)  # (B, D)


# ---------------------------------------------------------------------------
# Pass 2: tiny fused finalize (combine per-core partials + losses -> scalar)
# ---------------------------------------------------------------------------
def _finalize_focal_kernel(sim_ref, cnt_ref, toh_ref, loss_ref,
                           *, n_splits, n_b, inv_temp):
    n_rows = toh_ref.shape[0]
    sim = _combine_splits(sim_ref[...], n_splits, n_rows)
    loss_ref[...] = _focal_from_sim(sim, cnt_ref[...], toh_ref[...], n_b, inv_temp)


def _finalize_full_kernel(sim_ref, cnt_ref, toh_ref, mem_ref, xo_ref, an_ref, loss_ref,
                          *, n_splits, n_b, inv_temp):
    n_rows = toh_ref.shape[0]
    focal = _focal_from_sim(_combine_splits(sim_ref[...], n_splits, n_rows),
                            cnt_ref[...], toh_ref[...], n_b, inv_temp)

    mem = _combine_splits(mem_ref[...], n_splits, n_rows)               # (B, D)

    def _unit(v):
        # Reference divides by the raw norm (no eps); an all-zero row is NaN in both.
        return v / jnp.sqrt(jnp.sum(v * v, axis=1, keepdims=True))

    cos_rows = jnp.sum((_unit(mem) + _unit(xo_ref[...])) * _unit(an_ref[...]),
                       axis=1, keepdims=True)                           # (B, 1)
    contrast = -jnp.sum(cos_rows, axis=0, keepdims=True) * (1.0 / n_b)  # (1, 1)
    loss_ref[...] = focal + contrast


# ---------------------------------------------------------------------------
# Host-side tile sizing (VMEM-budget driven, bf16-sublane aligned)
# ---------------------------------------------------------------------------
def _pick_n_tile(n, d, requested=None):
    """Largest tn dividing n (per core), preferring multiples of 128/16/8, keeping the
    double-buffered (tn, D) bf16 feature stream + (tn, 1) label stream ~<= 8 MiB."""
    if requested is not None:
        assert n % requested == 0 and (requested % 8 == 0 or requested == n)
        return requested
    bytes_per_row = 2 * d + 4                       # bf16 feature row + int32 label
    cap = max(8, (4 << 20) // bytes_per_row)        # 2 buffers -> ~8 MiB of stream
    if n <= cap:
        return n
    for align in (128, 16, 8):
        t = (cap // align) * align
        while t >= align:
            if n % t == 0:
                return t
            t -= align
    return n                                        # fall back: full (equals array dim)


# ---------------------------------------------------------------------------
# Wrapper: Mask_HybridMemory.forward
# ---------------------------------------------------------------------------
def mask_hybrid_memory_forward(inputs, inputs_mask, another_inputs_full, indexes,
                               back, features, labels, label_weight, label_count,
                               num_classes, temp=0.05, momentum=0.2,
                               n_tile=None, n_splits=None):
    # inputs_mask / label_weight / label_count / momentum never reach the returned
    # loss in the reference forward (the masked_sim_mask branch is dead code).
    del inputs_mask, label_weight, label_count, momentum

    B, D = inputs.shape
    N = features.shape[0]
    C = int(num_classes)                            # static python int: no device sync
    c_pad = ((C + 127) // 128) * 128                # lane-dense class axis
    inv_temp = 1.0 / float(temp)

    # Megacore split of the N reduction (2x on v7x, serial elsewhere).  The (B, Cp)
    # output block needs B % 8 == 0 and N/2 % 8 == 0 to stay tile aligned.
    if n_splits is None:
        n_splits = 2 if (B % 8 == 0 and N % 16 == 0) else 1
    P = n_splits
    n_per = N // P
    tn = _pick_n_tile(n_per, D, requested=n_tile)
    K = n_per // tn

    # Tiny host-side, input-independent preprocessing.
    targets = labels[indexes].astype(jnp.int32)                               # (B,)
    counts = jnp.zeros((c_pad,), jnp.float32).at[labels].add(1.0).reshape(1, c_pad)
    tonehot = jax.nn.one_hot(targets, c_pad, dtype=jnp.float32)               # (B, Cp)

    x_bf = inputs.astype(jnp.bfloat16)
    f_bf = features.astype(jnp.bfloat16)
    lab2d = labels.astype(jnp.int32).reshape(N, 1)                            # (N, 1)
    tgt_row = targets.reshape(1, B)                                           # (1, B)

    # ---- pass 1 specs ----
    x_spec = pl.BlockSpec((B, D), lambda p, k: (0, 0))
    f_spec = pl.BlockSpec((tn, D), lambda p, k: (p * K + k, 0))
    l_spec = pl.BlockSpec((tn, 1), lambda p, k: (p * K + k, 0))
    t_spec = pl.BlockSpec((1, B), lambda p, k: (0, 0))
    sim_spec = pl.BlockSpec((B, c_pad), lambda p, k: (p, 0))
    mem_spec = pl.BlockSpec((B, D), lambda p, k: (p, 0))

    # VMEM budget: resident x/targets/out blocks + double-buffered feature+label stream,
    # with headroom; clamped to stay inside v7x's 64 MiB physical VMEM.
    stream_bytes = 2 * 2 * tn * (2 * D + 4)
    resident_bytes = B * (2 * D + 4 * D + 8 * c_pad) + 4 * c_pad
    vmem_limit = int(min(max(2 * (stream_bytes + resident_bytes), 16 << 20), 48 << 20))
    cparams = pltpu.CompilerParams(dimension_semantics=("parallel", "arbitrary"),
                                   vmem_limit_bytes=vmem_limit)

    out11 = jax.ShapeDtypeStruct((1, 1), jnp.float32)
    full = lambda shape: pl.BlockSpec(shape, lambda i: tuple(0 for _ in shape))

    if back == 0:
        sim_parts = pl.pallas_call(
            functools.partial(_accum_focal_kernel, c_pad=c_pad),
            grid=(P, K),
            out_shape=jax.ShapeDtypeStruct((P * B, c_pad), jnp.float32),
            in_specs=[x_spec, f_spec, l_spec],
            out_specs=sim_spec,
            compiler_params=cparams,
        )(x_bf, f_bf, lab2d)

        loss = pl.pallas_call(
            functools.partial(_finalize_focal_kernel, n_splits=P, n_b=float(B),
                              inv_temp=inv_temp),
            grid=(1,),
            out_shape=out11,
            in_specs=[full((P * B, c_pad)), full((1, c_pad)), full((B, c_pad))],
            out_specs=full((1, 1)),
        )(sim_parts, counts, tonehot)
        return loss[0, 0]

    sim_parts, mem_parts = pl.pallas_call(
        functools.partial(_accum_full_kernel, c_pad=c_pad),
        grid=(P, K),
        out_shape=(jax.ShapeDtypeStruct((P * B, c_pad), jnp.float32),
                   jax.ShapeDtypeStruct((P * B, D), jnp.float32)),
        in_specs=[x_spec, f_spec, l_spec, t_spec],
        out_specs=(sim_spec, mem_spec),
        compiler_params=cparams,
    )(x_bf, f_bf, lab2d, tgt_row)

    loss = pl.pallas_call(
        functools.partial(_finalize_full_kernel, n_splits=P, n_b=float(B),
                          inv_temp=inv_temp),
        grid=(1,),
        out_shape=out11,
        in_specs=[full((P * B, c_pad)), full((1, c_pad)), full((B, c_pad)),
                  full((P * B, D)), full((B, D)), full((B, D))],
        out_specs=full((1, 1)),
    )(sim_parts, counts, tonehot, mem_parts, inputs, another_inputs_full)
    return loss[0, 0]


# ---------------------------------------------------------------------------
# Pure-JAX reference (mirrors the PyTorch ops; the matmul operands carry the same
# bf16 rounding as the kernel so the check isolates kernel structure)
# ---------------------------------------------------------------------------
def reference_forward(inputs, another, indexes, back, features, labels,
                      num_classes, temp):
    C = int(num_classes)
    targets = labels[indexes]
    x_bf = inputs.astype(jnp.bfloat16)
    f_bf = features.astype(jnp.bfloat16)
    p = jnp.dot(x_bf, f_bf.T, preferred_element_type=jnp.float32)            # (B, N)
    p = p.astype(jnp.bfloat16).astype(jnp.float32)   # mirrors kernel's bf16 aggregation
    p = p / temp
    L = jax.nn.one_hot(labels, C, dtype=jnp.float32)                         # (N, C)
    sim = L.T @ p.T                                                          # (C, B)
    counts = jnp.sum(L, axis=0)[:, None]                                     # (C, 1)
    m = (counts > 0).astype(jnp.float32)
    sim = sim / (m * counts + (1.0 - m))
    mask = jnp.broadcast_to(m, sim.shape)
    sim_t, mask_t = sim.T, mask.T
    exps = jnp.exp(sim_t)
    me = exps * mask_t
    ms = me / (jnp.sum(me, axis=1, keepdims=True) + 1e-6)
    T = jax.nn.one_hot(targets, C, dtype=jnp.float32)
    fa = (T - T * ms) ** 4
    focal = jnp.mean(jnp.sum(-(fa * jnp.log(ms + 1e-6)), axis=1))
    if back == 0:
        return focal
    md = jnp.dot(L.T, f_bf.astype(jnp.float32))                              # (C, D)
    md = md / (m * counts + (1.0 - m))
    gi = md[targets]

    def cos(a, b):
        an = a / jnp.linalg.norm(a, axis=1, keepdims=True)
        bn = b / jnp.linalg.norm(b, axis=1, keepdims=True)
        return jnp.sum(an * bn, axis=1)

    return focal + (-jnp.mean(cos(gi, another))) + (-jnp.mean(cos(inputs, another)))


if __name__ == "__main__":
    B, D, N, C = 8, 32, 64, 16          # batch, num_features, num_samples, classes
    temp = 0.05

    key = jax.random.PRNGKey(0)
    k1, k2, k3, k4, k5, k6 = jax.random.split(key, 6)
    inputs = 0.1 * jax.random.normal(k1, (B, D), jnp.float32)
    inputs_mask = 0.1 * jax.random.normal(k2, (B, D), jnp.float32)
    another_inputs_full = 0.1 * jax.random.normal(k3, (B, D), jnp.float32)
    # Deterministic, non-zero memory bank (the module's buffer starts at zeros,
    # which would make the cosine terms degenerate); rows are L2-normalized.
    features = jax.random.normal(k4, (N, D), jnp.float32)
    features = features / jnp.linalg.norm(features, axis=1, keepdims=True)
    labels = jax.random.randint(k5, (N,), 0, C, jnp.int32)
    indexes = jax.random.randint(k6, (B,), 0, N, jnp.int32)
    label_weight = jnp.ones((N,), jnp.float32)
    label_count = jnp.zeros((N,), jnp.int32)

    for back in (0, 1):
        out = mask_hybrid_memory_forward(
            inputs, inputs_mask, another_inputs_full, indexes, back,
            features, labels, label_weight, label_count,
            num_classes=C, temp=temp, n_tile=16)   # n_tile=16, n_splits=2 -> grid (2, 2):
        out = jax.block_until_ready(out)           # exercises the megacore split AND the
        ref = reference_forward(inputs, another_inputs_full, indexes, back,   # chunked
                                features, labels, C, temp)                    # accumulation
        np.testing.assert_allclose(np.asarray(out), np.asarray(ref),
                                   rtol=1e-2, atol=1e-2)

    print("KERNEL_OK")
</pallas_src>

<mosaic_0001>
module attributes {stable_mosaic.version = 11 : i64} {
  func.func @_accum_focal_kernel(%arg0: i32, %arg1: i32, %arg2: memref<8x32xbf16, #tpu.memory_space<vmem>>, %arg3: memref<16x32xbf16, #tpu.memory_space<vmem>>, %arg4: memref<16x1xi32, #tpu.memory_space<vmem>>, %arg5: memref<8x128xf32, #tpu.memory_space<vmem>>) attributes {dimension_semantics = [#tpu.dimension_semantics<parallel>, #tpu.dimension_semantics<arbitrary>], iteration_bounds = array<i64: 2, 2>, scalar_prefetch = 0 : i64, scratch_operands = 0 : i64, tpu.core_type = #tpu.core_type<tc>, window_params = [{pipeline_mode = #tpu.pipeline_mode<synchronous>, transform_indices = @transform_0, window_bounds = array<i64: 8, 32>}, {transform_indices = @transform_1, window_bounds = array<i64: 16, 32>}, {transform_indices = @transform_2, window_bounds = array<i64: 16, 1>}, {transform_indices = @transform_3, window_bounds = array<i64: 8, 128>}]} {
    %c0_i32 = arith.constant 0 : i32
    %0 = arith.cmpi eq, %arg1, %c0_i32 : i32
    %1 = arith.extui %0 : i1 to i32
    %c0_i32_0 = arith.constant 0 : i32
    %2 = arith.cmpi ne, %1, %c0_i32_0 : i32
    scf.if %2 {
      %cst_13 = arith.constant 0.000000e+00 : f32
      %19 = vector.broadcast %cst_13 : f32 to vector<8x128xf32>
      %c0_14 = arith.constant 0 : index
      %c0_15 = arith.constant 0 : index
      %20 = vector.load %arg5[%c0_14, %c0_15] : memref<8x128xf32, #tpu.memory_space<vmem>>, vector<8x128xf32>
      tpu.vector_store %arg5[%c0_14, %c0_15], %19 {strides = array<i32>} : memref<8x128xf32, #tpu.memory_space<vmem>>, vector<8x128xf32>,
    } else {
    }
    %c0 = arith.constant 0 : index
    %c0_1 = arith.constant 0 : index
    %3 = vector.load %arg5[%c0, %c0_1] : memref<8x128xf32, #tpu.memory_space<vmem>>, vector<8x128xf32>
    %c0_2 = arith.constant 0 : index
    %c0_3 = arith.constant 0 : index
    %4 = vector.load %arg2[%c0_2, %c0_3] : memref<8x32xbf16, #tpu.memory_space<vmem>>, vector<8x32xbf16>
    %c0_4 = arith.constant 0 : index
    %c0_5 = arith.constant 0 : index
    %5 = vector.load %arg3[%c0_4, %c0_5] : memref<16x32xbf16, #tpu.memory_space<vmem>>, vector<16x32xbf16>
    %c0_6 = arith.constant 0 : index
    %c0_7 = arith.constant 0 : index
    %6 = vector.load %arg4[%c0_6, %c0_7] : memref<16x1xi32, #tpu.memory_space<vmem>>, vector<16x1xi32>
    %cst = arith.constant dense<0.000000e+00> : vector<8x16xf32>
    %7 = tpu.matmul %4, %5, %cst {dimension_numbers = #tpu.dot_dimension_numbers<[1], [1], [0], [0], [0, 0, 1, 0], [], []>} : vector<8x32xbf16>, vector<16x32xbf16>, vector<8x16xf32> -> vector<8x16xf32>
    %8 = tpu.iota {dimensions = array<i32: 1>} : vector<16x128xi32>
    %9 = vector.broadcast %6 : vector<16x1xi32> to vector<16x128xi32>
    %10 = arith.cmpi eq, %8, %9 : vector<16x128xi32>
    %cst_8 = arith.constant 1.000000e+00 : f32
    %cst_9 = arith.constant 0.000000e+00 : f32
    %11 = vector.broadcast %cst_8 : f32 to vector<16x128xf32>
    %12 = vector.broadcast %cst_9 : f32 to vector<16x128xf32>
    %13 = arith.select %10, %11, %12 : vector<16x128xi1>, vector<16x128xf32>
    %14 = arith.truncf %13 : vector<16x128xf32> to vector<16x128xbf16>
    %15 = arith.truncf %7 : vector<8x16xf32> to vector<8x16xbf16>
    %cst_10 = arith.constant dense<0.000000e+00> : vector<8x128xf32>
    %16 = tpu.matmul %15, %14, %cst_10 {dimension_numbers = #tpu.dot_dimension_numbers<[1], [0], [0], [1], [0, 0, 1, 1], [], []>} : vector<8x16xbf16>, vector<16x128xbf16>, vector<8x128xf32> -> vector<8x128xf32>
    %17 = arith.addf %3, %16 : vector<8x128xf32>
    %c0_11 = arith.constant 0 : index
    %c0_12 = arith.constant 0 : index
    %18 = vector.load %arg5[%c0_11, %c0_12] : memref<8x128xf32, #tpu.memory_space<vmem>>, vector<8x128xf32>
    tpu.vector_store %arg5[%c0_11, %c0_12], %17 {strides = array<i32>} : memref<8x128xf32, #tpu.memory_space<vmem>>, vector<8x128xf32>,
    return
  }
  func.func @transform_0(%arg0: i32, %arg1: i32) -> (i32, i32) {
    %c0_i32 = arith.constant 0 : i32
    %c0_i32_0 = arith.constant 0 : i32
    %c0_i32_1 = arith.constant 0 : i32
    return %c0_i32, %c0_i32_0 : i32, i32
  }
  func.func @transform_1(%arg0: i32, %arg1: i32) -> (i32, i32) {
    %c2_i32 = arith.constant 2 : i32
    %0 = arith.muli %arg0, %c2_i32 : i32
    %1 = arith.addi %0, %arg1 : i32
    %c0_i32 = arith.constant 0 : i32
    %c0_i32_0 = arith.constant 0 : i32
    return %1, %c0_i32 : i32, i32
  }
  func.func @transform_2(%arg0: i32, %arg1: i32) -> (i32, i32) {
    %c2_i32 = arith.constant 2 : i32
    %0 = arith.muli %arg0, %c2_i32 : i32
    %1 = arith.addi %0, %arg1 : i32
    %c0_i32 = arith.constant 0 : i32
    %c0_i32_0 = arith.constant 0 : i32
    return %1, %c0_i32 : i32, i32
  }
  func.func @transform_3(%arg0: i32, %arg1: i32) -> (i32, i32) {
    %c0_i32 = arith.constant 0 : i32
    %c0_i32_0 = arith.constant 0 : i32
    return %arg0, %c0_i32 : i32, i32
  }
}

</mosaic_0001>

<llo_original>
// kernel: tpu_custom_call.1
$region0: #{tpu_custom_call.1}
  #allocation0 [shape = 'u32[]', space=smem, size = 0x4, offset = 0x4, fixed_abs, tag = 'smem constant byte address 0x4 - core index']
  #allocation1 [shape = 'u32[144,128]{1,0:T(1,128)}', space=vmem, size = 0x12000, scoped, tag = 'internal scratch']
  %s0 = inlined_call_operand.vmem [shape: bf16[8,32], index: 0, kind: input, shape index: {}]
  %s1 = inlined_call_operand.vmem [shape: bf16[64,32], index: 1, kind: input, shape index: {}]
  %s2 = inlined_call_operand.vmem [shape: s32[64,1], index: 2, kind: input, shape index: {}]
  %s3 = inlined_call_operand.hbm [shape: f32[16,128], index: 3, kind: output, shape index: {}]
  %s4 = sld [smem:[#allocation0]]
  $region49: #{tpu_custom_call.1} parent=0
    _
  %s6 = ssub.s32 1, %s4
  %s7 = scalar_select 0, %s6, %s4
  $region1: #{tpu_custom_call.1} parent=0
    #allocation2 [shape = 'u8[8192]{0}', space=vmem, size = 0x2000, scoped, tag = 'output window, operand 0']
    #allocation3 [shape = 's32[2]{0}', space=sflag, size = 0x8, scoped, tag = 'scoped memory for tpu_custom_call.1']
    %8 = vsyncpa [#allocation3], 0
    %s9 = scalar_lea.sflag [#allocation3], 1
    %10 = vsyncpa %s9, 0
    loop: start=0, step=1, limit=6
    $region2: #{tpu_custom_call.1} parent=1 // loop_pre_header
      _
    $region3: #{tpu_custom_call.1} parent=1 // loop_header
      %s12 = sphi 0, %s16
      %p13 = scmp.ge.s32.totalorder %s12, 6
      %s19 = sphi 0, %s31
      %s20 = sphi 0, %s27
      %s21 = sphi 0, %s19
      %s22 = sphi 0, %s20
      %s23 = sphi 0, %s21
      %s24 = sphi 0, %s22
      %s32 = sphi 0, %s32
      %s34 = sphi 0, %s32
      %s35 = sphi 0, %s34
      %s49 = sphi 0, %s35
      %s59 = sphi 0, %s61
      %s62 = sphi 0, %s59
      %s63 = sphi 0, %s62
      %s79 = sphi 0, %s63
      %s89 = sphi 0, %s91
      %s92 = sphi 0, %s89
      %s93 = sphi 0, %s92
      %s109 = sphi 0, %s93
      %s115 = sphi 0, %s117
      %s118 = sphi 0, %s115
      %s119 = sphi 0, %s118
      %s135 = sphi 0, %s119
    $region4: #{tpu_custom_call.1} parent=1 // loop_header_branch
      %15 = sbr.rel (%p13) target = $region8
    $region5: #{tpu_custom_call.1} parent=1 // loop_body
      %s17 = ssub.s32 %s12, 1
      %s18 = ssub.s32 %s12, 2
      %s25 = sadd.s32 1, %s20
      %p26 = scmp.ge.s32.totalorder %s25, 2
      %s27 = scalar_select %p26, 0, %s25
      %s28 = sadd.s32 1, %s19
      %s29 = scalar_select %p26, %s28, %s19
      %p30 = scmp.ge.s32.totalorder %s29, 2
      %s31 = scalar_select %p30, 0, %s29
      %s33 = sadd.s32 %s32, 1
      %p36 = scmp.eq.s32.totalorder %s12, 3
      %p37 = scmp.ne.s32.totalorder %s32, %s34
      %p38 = scmp.eq.s32.totalorder %s12, 0
      %p39 = por %p37, %p38
      %p40 = scmp.ne.s32.totalorder %s32, %s34
      %p41 = scmp.eq.s32.totalorder %s17, 3
      %p42 = por %p40, %p41
      %p43 = scmp.ne.s32.totalorder %s34, %s35
      %p44 = scmp.eq.s32.totalorder %s17, 0
      %p45 = por %p43, %p44
      %p46 = scmp.ne.s32.totalorder %s34, %s35
      %p47 = scmp.eq.s32.totalorder %s18, 3
      %p48 = por %p46, %p47
      %p50 = scmp.ne.s32.totalorder %s35, %s49
      %p51 = scmp.eq.s32.totalorder %s18, 0
      %p52 = por %p50, %p51
      %s53 = smul.u32 %s19, 2
      %s54 = sadd.s32 %s53, %s20
      %s55 = smul.u32 %s31, 2
      %s56 = sadd.s32 %s55, %s27
      %s57 = ssub.s32 %s54, %s56
      %p58 = scmp.eq.s32.totalorder %s57, 0
      %s60 = sadd.s32 %s59, 1
      %s61 = scalar_select %p58, %s59, %s60
      %p64 = pneg %p58
      %p65 = scmp.eq.s32.totalorder %s12, 3
      %p66 = por %p64, %p65
      %p67 = scmp.ne.s32.totalorder %s59, %s62
      %p68 = scmp.eq.s32.totalorder %s12, 0
      %p69 = por %p67, %p68
      %p70 = scmp.ne.s32.totalorder %s59, %s62
      %p71 = scmp.eq.s32.totalorder %s17, 3
      %p72 = por %p70, %p71
      %p73 = scmp.ne.s32.totalorder %s62, %s63
      %p74 = scmp.eq.s32.totalorder %s17, 0
      %p75 = por %p73, %p74
      %p76 = scmp.ne.s32.totalorder %s62, %s63
      %p77 = scmp.eq.s32.totalorder %s18, 3
      %p78 = por %p76, %p77
      %p80 = scmp.ne.s32.totalorder %s63, %s79
      %p81 = scmp.eq.s32.totalorder %s18, 0
      %p82 = por %p80, %p81
      %s83 = smul.u32 %s19, 2
      %s84 = sadd.s32 %s83, %s20
      %s85 = smul.u32 %s31, 2
      %s86 = sadd.s32 %s85, %s27
      %s87 = ssub.s32 %s84, %s86
      %p88 = scmp.eq.s32.totalorder %s87, 0
      %s90 = sadd.s32 %s89, 1
      %s91 = scalar_select %p88, %s89, %s90
      %p94 = pneg %p88
      %p95 = scmp.eq.s32.totalorder %s12, 3
      %p96 = por %p94, %p95
      %p97 = scmp.ne.s32.totalorder %s89, %s92
      %p98 = scmp.eq.s32.totalorder %s12, 0
      %p99 = por %p97, %p98
      %p100 = scmp.ne.s32.totalorder %s89, %s92
      %p101 = scmp.eq.s32.totalorder %s17, 3
      %p102 = por %p100, %p101
      %p103 = scmp.ne.s32.totalorder %s92, %s93
      %p104 = scmp.eq.s32.totalorder %s17, 0
      %p105 = por %p103, %p104
      %p106 = scmp.ne.s32.totalorder %s92, %s93
      %p107 = scmp.eq.s32.totalorder %s18, 3
      %p108 = por %p106, %p107
      %p110 = scmp.ne.s32.totalorder %s93, %s109
      %p111 = scmp.eq.s32.totalorder %s18, 0
      %p112 = por %p110, %p111
      %s113 = ssub.s32 %s19, %s31
      %p114 = scmp.eq.s32.totalorder %s113, 0
      %s116 = sadd.s32 %s115, 1
      %s117 = scalar_select %p114, %s115, %s116
      %p120 = pneg %p114
      %p121 = scmp.eq.s32.totalorder %s12, 3
      %p122 = por %p120, %p121
      %p123 = scmp.ne.s32.totalorder %s115, %s118
      %p124 = scmp.eq.s32.totalorder %s12, 0
      %p125 = por %p123, %p124
      %p126 = scmp.ne.s32.totalorder %s115, %s118
      %p127 = scmp.eq.s32.totalorder %s17, 3
      %p128 = por %p126, %p127
      %p129 = scmp.ne.s32.totalorder %s118, %s119
      %p130 = scmp.eq.s32.totalorder %s17, 0
      %p131 = por %p129, %p130
      %p132 = scmp.ne.s32.totalorder %s118, %s119
      %p133 = scmp.eq.s32.totalorder %s18, 3
      %p134 = por %p132, %p133
      %p136 = scmp.ne.s32.totalorder %s119, %s135
      %p137 = scmp.eq.s32.totalorder %s18, 0
      %p138 = por %p136, %p137
      %p139 = scmp.le.s32.totalorder 1, %s12
      %p140 = scmp.lt.s32.totalorder %s12, 5
      %p141 = pnand %p139, %p140
      %p142 = pneg %p141
      // Predicated region
      $region9: #{tpu_custom_call.1} parent=5 // pred_check
        _
      $region10: #{tpu_custom_call.1} parent=5 // pred_check_branch
        %144 = sbr.rel (%p141) target = $region12
      $region11: #{tpu_custom_call.1} parent=5 // pred_region
        %s145 = ssub.s32 %s12, 1
        // Predicated region
        $region13: #{tpu_custom_call.1} parent=11 // pred_check
          %p146 = pneg %p45
        $region14: #{tpu_custom_call.1} parent=11 // pred_check_branch
          %148 = sbr.rel (%p146) target = $region16
        $region15: #{tpu_custom_call.1} parent=11 // pred_region
          _
        $region16: #{tpu_custom_call.1} parent=11 // pred_fallthru
          _
      $region12: #{tpu_custom_call.1} parent=5 // pred_fallthru
        _
      %p149 = scmp.lt.s32.totalorder %s12, 4
      // Predicated region
      $region17: #{tpu_custom_call.1} parent=5 // pred_check
        %p150 = pneg %p149
      $region18: #{tpu_custom_call.1} parent=5 // pred_check_branch
        %152 = sbr.rel (%p150) target = $region20
      $region19: #{tpu_custom_call.1} parent=5 // pred_region
        // Predicated region
        $region21: #{tpu_custom_call.1} parent=19 // pred_check
          %p153 = pneg %p69
        $region22: #{tpu_custom_call.1} parent=19 // pred_check_branch
          %155 = sbr.rel (%p153) target = $region24
        $region23: #{tpu_custom_call.1} parent=19 // pred_region
          %s156 = smul.u32 %s19, 2
          %s157 = sadd.s32 %s156, %s20
          %s158 = smul.u32 2, %s157
          %p159 = scmp.lt.s32.totalorder %s158, 7
          %s160 = scalar_select %p159, %s158, 7
          %s161 = smul.addr %s160, 4
          %s162 = scalar_lea.vmem %s1, %s161
          %s163 = smul.u32 %s19, 2
          %s164 = sadd.s32 %s163, %s20
          %s165 = smul.u32 2, %s164
        $region24: #{tpu_custom_call.1} parent=19 // pred_fallthru
          _
        // Predicated region
        $region25: #{tpu_custom_call.1} parent=19 // pred_check
          %p166 = pneg %p99
        $region26: #{tpu_custom_call.1} parent=19 // pred_check_branch
          %168 = sbr.rel (%p166) target = $region28
        $region27: #{tpu_custom_call.1} parent=19 // pred_region
          %s169 = smul.u32 %s19, 2
          %s170 = sadd.s32 %s169, %s20
          %s171 = smul.u32 2, %s170
          %p172 = scmp.lt.s32.totalorder %s171, 7
          %s173 = scalar_select %p172, %s171, 7
          %s174 = smul.addr %s173, 8
          %s175 = scalar_lea.vmem %s2, %s174
          %s176 = smul.u32 %s19, 2
          %s177 = sadd.s32 %s176, %s20
          %s178 = smul.u32 2, %s177
        $region28: #{tpu_custom_call.1} parent=19 // pred_fallthru
          _
      $region20: #{tpu_custom_call.1} parent=5 // pred_fallthru
        _
      %p179 = scmp.le.s32.totalorder 1, %s12
      %p180 = scmp.lt.s32.totalorder %s12, 5
      %p181 = pnand %p179, %p180
      %p182 = pneg %p181
      // Predicated region
      $region29: #{tpu_custom_call.1} parent=5 // pred_check
        _
      $region30: #{tpu_custom_call.1} parent=5 // pred_check_branch
        %184 = sbr.rel (%p181) target = $region32
      $region31: #{tpu_custom_call.1} parent=5 // pred_region
        %s185 = ssub.s32 %s12, 1
        %p186 = pneg %p45
        %p187 = pneg %p42
        %s188 = smul.u32 %s21, 2
        %s189 = sadd.s32 %s188, %s22
        %s190 = smul.u32 2, %s189
        %p191 = scmp.lt.s32.totalorder %s190, 7
        %s192 = scalar_select %p191, %s190, 7
        %s193 = smul.addr %s192, 4
        %s194 = scalar_lea.vmem %s1, %s193
        %p195 = pneg %p75
        %p196 = pneg %p72
        %s197 = smul.u32 %s21, 2
        %s198 = sadd.s32 %s197, %s22
        %s199 = smul.u32 2, %s198
        %p200 = scmp.lt.s32.totalorder %s199, 7
        %s201 = scalar_select %p200, %s199, 7
        %s202 = smul.addr %s201, 8
        %s203 = scalar_lea.vmem %s2, %s202
        %p204 = pneg %p105
        %p205 = pneg %p102
        %p206 = pneg %p131
        %p207 = pneg %p128
        %s208 = sand.u32 %s118, 1
        %s209 = scalar_lea.sflag [#allocation3], %s208
        %s210 = sand.u32 %s118, 1
        %s211 = smul.addr %s210, 8
        %s212 = scalar_lea.vmem [#allocation2], %s211
        %s213 = smul.u32 %s21, 2
        %s214 = sadd.s32 %s213, %s22
        %s215 = smul.u32 2, %s214
        %p216 = scmp.lt.s32.totalorder %s215, 7
        %s217 = scalar_select %p216, %s215, 7
        %s218 = smul.addr %s217, 4
        %s219 = scalar_lea.vmem %s1, %s218
        %s220 = smul.u32 %s21, 2
        %s221 = sadd.s32 %s220, %s22
        %s222 = smul.u32 2, %s221
        %s223 = smul.u32 %s21, 2
        %s224 = sadd.s32 %s223, %s22
        %s225 = smul.u32 2, %s224
        %p226 = scmp.lt.s32.totalorder %s225, 7
        %s227 = scalar_select %p226, %s225, 7
        %s228 = smul.addr %s227, 8
        %s229 = scalar_lea.vmem %s2, %s228
        %s230 = smul.u32 %s21, 2
        %s231 = sadd.s32 %s230, %s22
        %s232 = smul.u32 2, %s231
        %p234 = scmp.eq.s32.totalorder %s22, 0
        // Predicated region
        $region33: #{tpu_custom_call.1} parent=31 // pred_check
          %p235 = pneg %p234
        $region34: #{tpu_custom_call.1} parent=31 // pred_check_branch
          %237 = sbr.rel (%p235) target = $region36
        $region35: #{tpu_custom_call.1} parent=31 // pred_region
          %238 = vst [vmem:[%s212] sm:$0xff] 0.0
        $region36: #{tpu_custom_call.1} parent=31 // pred_fallthru
          _
        %v239 = vld [vmem:[%s212] sm:$0xff]
        %v240 = vld [vmem:[%s0] sm:$0xf]
        %v241 = vld [vmem:[%s219] sm:$0xf]
        %v242 = vld [vmem:[%s219 + $0x4] sm:$0xf]
        %v243 = vld [vmem:[%s229] sm:$0xff]
        %v244 = vld [vmem:[%s229 + $0x8] sm:$0xff]
        %v247 = vunpack.c.l.b16 %v241
        %v248 = vunpack.c.l.b16 %v242
        %v249 = vpack.c.b16 %v248, %v247
        %vm250 = vcmask 261120
        %v252 = vsel %vm250, %v240, 0
        %v255 = vsel %vm250, %v249, 0
        %257 = vmatprep.subr.bf16.mxu0 0
        %258 = vmatpush1.bf16.xpose.msra.mxu0 %v255
        %259 = vmatprep.subr.bf16.mxu0 0
        %260 = vmatpush1.bf16.xpose.msra.mxu0 0
        %261 = vmatprep.subr.bf16.mxu0 0
        %262 = vmatpush1.bf16.xpose.msra.mxu0 0
        %263 = vmatprep.subr.bf16.mxu0 0
        %264 = vmatpush1.bf16.xpose.msra.mxu0 0
        %265 = vmatprep.subr.bf16.mxu0 0
        %266 = vmatpush1.bf16.xpose.msra.mxu0 0
        %267 = vmatprep.subr.bf16.mxu0 0
        %268 = vmatpush1.bf16.xpose.msra.mxu0 0
        %269 = vmatprep.subr.bf16.mxu0 0
        %270 = vmatpush1.bf16.xpose.msra.mxu0 0
        %271 = vmatprep.subr.bf16.mxu0 0
        %272 = vmatpush1.bf16.xpose.msra.mxu0 0
        %273 = vmatprep.subr.bf16.mxu0 0
        %274 = vmatpush1.bf16.xpose.msra.mxu0 0
        %275 = vmatprep.subr.bf16.mxu0 0
        %276 = vmatpush1.bf16.xpose.msra.mxu0 0
        %277 = vmatprep.subr.bf16.mxu0 0
        %278 = vmatpush1.bf16.xpose.msra.mxu0 0
        %279 = vmatprep.subr.bf16.mxu0 0
        %280 = vmatpush1.bf16.xpose.msra.mxu0 0
        %281 = vmatprep.subr.bf16.mxu0 0
        %282 = vmatpush1.bf16.xpose.msra.mxu0 0
        %283 = vmatprep.subr.bf16.mxu0 0
        %284 = vmatpush1.bf16.xpose.msra.mxu0 0
        %285 = vmatprep.subr.bf16.mxu0 0
        %286 = vmatpush1.bf16.xpose.msra.mxu0 0
        %287 = vmatprep.subr.bf16.mxu0 0
        %288 = vmatpush1.bf16.xpose.msra.mxu0 0
        %289 = vmatprep.mubr.bf16.mxu0 0
        %290 = vmatmul.mubr.bf16.gmra.mrb[0].mxu0 %v252
        %v291 = vpop.f32.mrb[0].mxu0
        %v292 = vadd.f32 0.0, %v291
        %v293 = vpop.f32.mrb[0].mxu0
        %v294 = vpop.f32.mrb[0].mxu0
        %v295 = vpop.f32.mrb[0].mxu0
        %296 = vdwg.mxu0
        %v297 = vlaneseq
        %v298 = vand.u32 %v297, 127
        %299 = vset.pattern.permute.xlu0 0
        %300 = vperm.xlu0 %299, %v243
        %v301 = vpop.permute.xlu0 %300
        %302 = vset.pattern.permute.xlu0 0
        %303 = vperm.xlu0 %302, %v244
        %v304 = vpop.permute.xlu0 %303
        %vm305 = vcmp.eq.s32.totalorder %v298, %v301
        %vm306 = vcmp.eq.s32.totalorder %v298, %v304
        %v307 = vsel %vm305, 1.0, 0.0
        %v308 = vsel %vm306, 1.0, 0.0
        %v309 = vpack.c.bf16 %v308, %v307
        %v310 = vpack.c.bf16 %v292, %v292
        %vm311 = vcmask 130048
        %v313 = vsel %vm311, %v310, 0
        %315 = vmatprep.subr.bf16.mxu0 0
        %316 = vmatpush1.bf16.msra.mxu0 %v309
        %317 = vmatprep.subr.bf16.mxu0 0
        %318 = vmatpush1.bf16.msra.mxu0 0
        %319 = vmatprep.subr.bf16.mxu0 0
        %320 = vmatpush1.bf16.msra.mxu0 0
        %321 = vmatprep.subr.bf16.mxu0 0
        %322 = vmatpush1.bf16.msra.mxu0 0
        %323 = vmatprep.subr.bf16.mxu0 0
        %324 = vmatpush1.bf16.msra.mxu0 0
        %325 = vmatprep.subr.bf16.mxu0 0
        %326 = vmatpush1.bf16.msra.mxu0 0
        %327 = vmatprep.subr.bf16.mxu0 0
        %328 = vmatpush1.bf16.msra.mxu0 0
        %329 = vmatprep.subr.bf16.mxu0 0
        %330 = vmatpush1.bf16.msra.mxu0 0
        %331 = vmatprep.subr.bf16.mxu0 0
        %332 = vmatpush1.bf16.msra.mxu0 0
        %333 = vmatprep.subr.bf16.mxu0 0
        %334 = vmatpush1.bf16.msra.mxu0 0
        %335 = vmatprep.subr.bf16.mxu0 0
        %336 = vmatpush1.bf16.msra.mxu0 0
        %337 = vmatprep.subr.bf16.mxu0 0
        %338 = vmatpush1.bf16.msra.mxu0 0
        %339 = vmatprep.subr.bf16.mxu0 0
        %340 = vmatpush1.bf16.msra.mxu0 0
        %341 = vmatprep.subr.bf16.mxu0 0
        %342 = vmatpush1.bf16.msra.mxu0 0
        %343 = vmatprep.subr.bf16.mxu0 0
        %344 = vmatpush1.bf16.msra.mxu0 0
        %345 = vmatprep.subr.bf16.mxu0 0
        %346 = vmatpush1.bf16.msra.mxu0 0
        %347 = vmatprep.mubr.bf16.mxu0 0
        %348 = vmatmul.mubr.bf16.gmra.mrb[0].mxu0 %v313
        %v349 = vpop.f32.mrb[0].mxu0
        %v350 = vadd.f32 0.0, %v349
        %v351 = vpop.f32.mrb[0].mxu0
        %v352 = vpop.f32.mrb[0].mxu0
        %v353 = vpop.f32.mrb[0].mxu0
        %354 = vdwg.mxu0
        %v355 = vadd.f32 %v239, %v350
        %356 = vst [vmem:[%s212] sm:$0xff] %v355
        %s357 = sand.u32 %s118, 1
        %s358 = scalar_lea.sflag [#allocation3], %s357
        %s359 = sand.u32 %s118, 1
        %s360 = smul.addr %s359, 8
        %s361 = scalar_lea.vmem [#allocation2], %s360
        // Predicated region
        $region37: #{tpu_custom_call.1} parent=31 // pred_check
          %p362 = pneg %p128
        $region38: #{tpu_custom_call.1} parent=31 // pred_check_branch
          %364 = sbr.rel (%p362) target = $region40
        $region39: #{tpu_custom_call.1} parent=31 // pred_region
          %s366 = ssub.s32 128, 128
          %367 = vsyncadd %s358, %s366
          %s368 = smul.addr %s21, 128
          %s369 = scalar_lea.hbm %s3, %s368
          %s371 = sshll.u32 %s361, 4
          %s372 = int_to_ptr.vmem [resolvable:$true] %s371
          %374 = dma.vmem_to_hbm [thread:$0]  %s372, 128, %s369, %s358
        $region40: #{tpu_custom_call.1} parent=31 // pred_fallthru
          _
      $region32: #{tpu_custom_call.1} parent=5 // pred_fallthru
        _
      %p375 = scmp.le.s32.totalorder 2, %s12
      // Predicated region
      $region41: #{tpu_custom_call.1} parent=5 // pred_check
        %p376 = pneg %p375
      $region42: #{tpu_custom_call.1} parent=5 // pred_check_branch
        %378 = sbr.rel (%p376) target = $region44
      $region43: #{tpu_custom_call.1} parent=5 // pred_region
        %s379 = ssub.s32 %s12, 2
        // Predicated region
        $region45: #{tpu_custom_call.1} parent=43 // pred_check
          %p380 = pneg %p134
        $region46: #{tpu_custom_call.1} parent=43 // pred_check_branch
          %382 = sbr.rel (%p380) target = $region48
        $region47: #{tpu_custom_call.1} parent=43 // pred_region
          %s383 = sand.u32 %s119, 1
          %s384 = scalar_lea.sflag [#allocation3], %s383
          %s385 = sand.u32 %s119, 1
          %s386 = smul.addr %s385, 8
          %s387 = scalar_lea.vmem [#allocation2], %s386
          %388 = dma.done %s384, 128
        $region48: #{tpu_custom_call.1} parent=43 // pred_fallthru
          _
      $region44: #{tpu_custom_call.1} parent=5 // pred_fallthru
        _
    $region6: #{tpu_custom_call.1} parent=1 // loop_footer
      %s16 = sadd.s32 1, %s12
    $region7: #{tpu_custom_call.1} parent=1 // loop_footer_branch
      %11 = sbr.rel target = $region3
    $region8: #{tpu_custom_call.1} parent=1 // loop_exit
      _
    %389 = vsyncpa [#allocation3], 1
    %s390 = scalar_lea.sflag [#allocation3], 1
    %391 = vsyncpa %s390, 1

</llo_original>
